<compile_context>
chip_gen: v5e
topology: v5e:2x2
jax: 0.10.0
libtpu: 0.0.40
codegen_flags: <defaults>
</compile_context>

<pallas_src>
import functools
import math

import jax
import jax.numpy as jnp
from jax import lax
from jax.experimental import pallas as pl
from jax.experimental.pallas import tpu as pltpu


def _round_up(x: int, m: int) -> int:
    return (x + m - 1) // m * m


def _f32_vmem_bytes(rows: int, cols: int) -> int:
    """(8,128)-tiled f32 footprint of a 2D array resident in VMEM."""
    return _round_up(max(rows, 1), 8) * _round_up(max(cols, 1), 128) * 4


def _renorm_scale_bias(e, scale, bias):
    """Embedding(max_norm=1, norm_type=2) renorm + per-feature scale and bias."""
    nrm = jnp.sqrt(jnp.sum(e * e, axis=-1, keepdims=True))          # (rows, 1)
    e = e * jnp.where(nrm > 1.0, 1.0 / (nrm + 1e-7), 1.0)           # PyTorch: max_norm/(norm+eps)
    return e * scale + bias


# --------------------------------------------------------------------------------------
# Fast path: table VMEM-resident, gather = dynamic VMEM loads (no DMAs, no semaphores).
# --------------------------------------------------------------------------------------
def _resident_kernel(idx_ref, w_ref, scale_ref, bias_ref, out_ref, *, rows, bf):
    base = pl.program_id(0) * rows

    def gather_one(r):
        g = jnp.minimum(base + r, bf - 1)          # clamp: ragged last tile stays in range
        row = idx_ref[g]                           # SMEM scalar read
        out_ref[pl.ds(r, 1), :] = w_ref[pl.ds(row, 1), :]   # gather straight into the output block

    if rows <= 128:
        for r in range(rows):                      # small tile: fully unrolled
            gather_one(r)
    else:
        def body(r, carry):
            gather_one(r)
            return carry
        lax.fori_loop(0, rows, body, 0, unroll=8)

    e = out_ref[...]                               # (rows, D) f32, vectorized epilogue
    out_ref[...] = _renorm_scale_bias(e, scale_ref[...], bias_ref[...]).astype(out_ref.dtype)


# --------------------------------------------------------------------------------------
# Fallback: table stays in HBM, per-row DMAs double-buffered across grid steps.
# --------------------------------------------------------------------------------------
def _hbm_gather_kernel(idx_ref, w_hbm, scale_ref, bias_ref, out_ref, gath, sems, *,
                       rows, bf):
    i = pl.program_id(0)
    n = pl.num_programs(0)
    slot = i % 2

    def start_fetch(step, s):
        base = step * rows
        for r in range(rows):
            g = jnp.minimum(base + r, bf - 1)      # clamp ragged tail
            row = idx_ref[g]                       # all SMEM reads issued before any wait
            pltpu.make_async_copy(
                w_hbm.at[pl.ds(row, 1), :],
                gath.at[s, pl.ds(r, 1), :],
                sems.at[s],
            ).start()

    @pl.when(i == 0)
    def _prime():
        start_fetch(0, 0)

    @pl.when(i + 1 < n)
    def _prefetch_next():                          # overlap next tile's gather with compute
        start_fetch(i + 1, 1 - slot)

    # Wait for this slot's `rows` equal-sized row copies on the slot's single semaphore.
    for r in range(rows):
        pltpu.make_async_copy(
            w_hbm.at[pl.ds(0, 1), :],              # placeholder src: only the size matters
            gath.at[slot, pl.ds(r, 1), :],
            sems.at[slot],
        ).wait()

    e = gath[slot]                                 # (rows, D) f32
    out_ref[...] = _renorm_scale_bias(e, scale_ref[...], bias_ref[...]).astype(out_ref.dtype)


# --------------------------------------------------------------------------------------
# Wrapper
# --------------------------------------------------------------------------------------
def categorical_feature_tokenizer(x, weight, category_offsets, bias=None, value=None, *,
                                  rows_per_step=512, vmem_budget_bytes=40 * 2**20,
                                  force_hbm_gather=False):
    """Pallas forward of CategoricalFeatureTokenizer.

    x:                (B, F) integer categorical codes, feature f in [0, card[f])
    weight:           (C, D) f32 embedding table, C = sum(cardinalities)
    category_offsets: (F,) int cumulative offsets [0, c0, c0+c1, ...]
    bias:             optional (F, D) f32
    value:            optional (F,) f32 per-feature scale
    returns:          (B, F, D) f32
    """
    B, F = x.shape
    C, D = weight.shape
    BF = B * F

    # Flat gathered-row ids, clamped so a bad category code can never index out of bounds.
    idx = (x.astype(jnp.int32) + category_offsets.astype(jnp.int32)[None, :]).reshape(-1)
    idx = jnp.clip(idx, 0, C - 1)
    # TODO(synk): for huge B*F (>~100K) the flat id vector should itself be blocked instead
    # of being scalar-prefetched wholesale into SMEM.

    w = weight.astype(jnp.float32)       # NOTE: no D padding -- the table keeps its natural width

    # Path selection: keep the table VMEM-resident whenever its tiled footprint fits the
    # budget (default 40 MiB keeps headroom on v7x's 64 MiB VMEM; raise on v5e/v6e).
    table_vmem = _f32_vmem_bytes(C, D)
    use_resident = (not force_hbm_gather) and table_vmem <= max(0, vmem_budget_bytes - (8 << 20))

    # Rows (flat (b, f) pairs) per grid step.  Big tiles amortize per-step overhead.
    # Must be a multiple of F (pre-tiled scale/bias phase) and of 8 (sublane rule)
    # unless a single block covers the whole array.
    target = rows_per_step if use_resident else min(rows_per_step, 256)
    if BF <= target:
        rows = BF
    else:
        unit = math.lcm(F, 8)
        rows = max(unit, (target // unit) * unit)
    n_steps = -(-BF // rows)

    # Per-feature scale / bias pre-tiled ONCE to a single (rows, D) VMEM-resident block.
    scale_fd = (jnp.broadcast_to(value.astype(jnp.float32)[:, None], (F, D))
                if value is not None else jnp.ones((F, D), jnp.float32))
    bias_fd = bias.astype(jnp.float32) if bias is not None else jnp.zeros((F, D), jnp.float32)
    reps = rows // F
    scale_tile = jnp.tile(scale_fd, (reps, 1))
    bias_tile = jnp.tile(bias_fd, (reps, 1))

    tiles_vmem = 4 * _f32_vmem_bytes(rows, D)                 # out double-buffer + scale + bias
    gather_vmem = 0 if use_resident else 2 * _f32_vmem_bytes(rows, D)
    need = (table_vmem if use_resident else 0) + tiles_vmem + gather_vmem
    vmem_limit = int(min(64 * 2**20, max(32 * 2**20, 2 * need)))   # explicit, v7x-safe cap

    cost = pl.CostEstimate(
        flops=int(6 * BF * D),
        transcendentals=int(BF),
        bytes_accessed=int(C * D * 4 + BF * D * 4 + BF * 4 + 2 * rows * D * 4),
    )

    if use_resident:
        kernel = functools.partial(_resident_kernel, rows=rows, bf=BF)
        grid_spec = pltpu.PrefetchScalarGridSpec(
            num_scalar_prefetch=1,
            grid=(n_steps,),
            in_specs=[
                pl.BlockSpec((C, D), lambda i, idx_sm: (0, 0)),       # table, VMEM resident
                pl.BlockSpec((rows, D), lambda i, idx_sm: (0, 0)),    # scale, VMEM resident
                pl.BlockSpec((rows, D), lambda i, idx_sm: (0, 0)),    # bias,  VMEM resident
            ],
            out_specs=pl.BlockSpec((rows, D), lambda i, idx_sm: (i, 0)),
        )
        dims = ("parallel",)               # steps independent -> both v7x TCs can share them
    else:
        kernel = functools.partial(_hbm_gather_kernel, rows=rows, bf=BF)
        grid_spec = pltpu.PrefetchScalarGridSpec(
            num_scalar_prefetch=1,
            grid=(n_steps,),
            in_specs=[
                pl.BlockSpec(memory_space=pl.ANY),                    # table stays in HBM
                pl.BlockSpec((rows, D), lambda i, idx_sm: (0, 0)),    # scale, VMEM resident
                pl.BlockSpec((rows, D), lambda i, idx_sm: (0, 0)),    # bias,  VMEM resident
            ],
            out_specs=pl.BlockSpec((rows, D), lambda i, idx_sm: (i, 0)),
            scratch_shapes=[
                pltpu.VMEM((2, rows, D), jnp.float32),                # double-buffered gather
                pltpu.SemaphoreType.DMA((2,)),                        # one semaphore per slot
            ],
        )
        dims = ("arbitrary",)              # cross-step prefetch chain -> keep sequential

    out_flat = pl.pallas_call(
        kernel,
        out_shape=jax.ShapeDtypeStruct((BF, D), jnp.float32),
        grid_spec=grid_spec,
        compiler_params=pltpu.CompilerParams(
            dimension_semantics=dims,
            vmem_limit_bytes=vmem_limit,
        ),
        cost_estimate=cost,
    )(idx, w, scale_tile, bias_tile)

    return out_flat.reshape(B, F, D)       # contiguous -> free reshape, no slice, no padding


# --------------------------------------------------------------------------------------
# Pure-JAX reference (matches the PyTorch forward, incl. the max_norm/(norm+1e-7) eps).
# --------------------------------------------------------------------------------------
def _reference(x, weight, offsets, bias, value):
    idx = x.astype(jnp.int32) + offsets.astype(jnp.int32)[None, :]
    e = weight.astype(jnp.float32)[idx]                          # (B, F, D)
    nrm = jnp.sqrt(jnp.sum(e * e, axis=-1, keepdims=True))
    e = e * jnp.where(nrm > 1.0, 1.0 / (nrm + 1e-7), 1.0)
    if value is not None:
        e = e * value[None, :, None]
    if bias is not None:
        e = e + bias[None]
    return e


if __name__ == "__main__":
    key = jax.random.PRNGKey(0)
    cardinalities = [3, 10, 7, 5]          # 4 categorical features
    F = len(cardinalities)
    d_token = 24
    C = sum(cardinalities)

    k_w, k_b, k_v, k_x1, k_x2, k_x3 = jax.random.split(key, 6)
    s = 1.0 / math.sqrt(d_token)
    weight = jax.random.uniform(k_w, (C, d_token), jnp.float32, -s, s)
    # Inflate every third row above unit norm so the max_norm=1 branch is exercised.
    weight = weight * jnp.where((jnp.arange(C) % 3 == 0)[:, None], 12.0, 1.0)
    bias = jax.random.uniform(k_b, (F, d_token), jnp.float32, -s, s)
    value = jax.random.uniform(k_v, (F,), jnp.float32, 0.5, 1.5)

    offs = [0]
    for c in cardinalities[:-1]:
        offs.append(offs[-1] + c)
    category_offsets = jnp.array(offs, dtype=jnp.int32)
    cards = jnp.array(cardinalities, jnp.int32)

    ok = True

    # 1) Resident-table fast path, single large tile.
    B1 = 8
    x1 = jax.random.randint(k_x1, (B1, F), 0, cards)
    out1 = jax.block_until_ready(
        categorical_feature_tokenizer(x1, weight, category_offsets, bias=bias, value=value))
    assert out1.shape == (B1, F, d_token), out1.shape
    ok &= bool(jnp.allclose(out1, _reference(x1, weight, category_offsets, bias, value),
                            atol=1e-5, rtol=1e-5))

    # 2) Resident path with a multi-step grid and a ragged last tile (B*F = 52, rows = 16).
    B2 = 13
    x2 = jax.random.randint(k_x2, (B2, F), 0, cards)
    out2 = jax.block_until_ready(
        categorical_feature_tokenizer(x2, weight, category_offsets, bias=bias, value=value,
                                      rows_per_step=16))
    assert out2.shape == (B2, F, d_token), out2.shape
    ok &= bool(jnp.allclose(out2, _reference(x2, weight, category_offsets, bias, value),
                            atol=1e-5, rtol=1e-5))

    # 3) HBM-gather fallback (double-buffered per-row DMAs), ragged last tile (B*F = 40, rows = 16).
    B3 = 10
    x3 = jax.random.randint(k_x3, (B3, F), 0, cards)
    out3 = jax.block_until_ready(
        categorical_feature_tokenizer(x3, weight, category_offsets, bias=bias, value=value,
                                      rows_per_step=16, force_hbm_gather=True))
    assert out3.shape == (B3, F, d_token), out3.shape
    ok &= bool(jnp.allclose(out3, _reference(x3, weight, category_offsets, bias, value),
                            atol=1e-5, rtol=1e-5))

    if not ok:
        raise AssertionError("Pallas output mismatch vs reference")
    print("KERNEL_OK")
</pallas_src>

<mosaic_0001>
module attributes {stable_mosaic.version = 11 : i64} {
  func.func @_resident_kernel(%arg0: i32, %arg1: memref<32xi32, #tpu.memory_space<smem>>, %arg2: memref<25x24xf32, #tpu.memory_space<vmem>>, %arg3: memref<32x24xf32, #tpu.memory_space<vmem>>, %arg4: memref<32x24xf32, #tpu.memory_space<vmem>>, %arg5: memref<32x24xf32, #tpu.memory_space<vmem>>) attributes {dimension_semantics = [#tpu.dimension_semantics<parallel>], iteration_bounds = array<i64: 1>, scalar_prefetch = 1 : i64, scratch_operands = 0 : i64, tpu.core_type = #tpu.core_type<tc>, window_params = [{pipeline_mode = #tpu.pipeline_mode<synchronous>, transform_indices = @transform_0, window_bounds = array<i64: 25, 24>}, {pipeline_mode = #tpu.pipeline_mode<synchronous>, transform_indices = @transform_1, window_bounds = array<i64: 32, 24>}, {pipeline_mode = #tpu.pipeline_mode<synchronous>, transform_indices = @transform_2, window_bounds = array<i64: 32, 24>}, {transform_indices = @transform_3, window_bounds = array<i64: 32, 24>}]} {
    %c32_i32 = arith.constant 32 : i32
    %0 = arith.muli %arg0, %c32_i32 : i32
    %c0_i32 = arith.constant 0 : i32
    %1 = arith.addi %0, %c0_i32 : i32
    %c31_i32 = arith.constant 31 : i32
    %2 = arith.minsi %1, %c31_i32 : i32
    %3 = arith.index_cast %2 : i32 to index
    %4 = memref.load %arg1[%3] : memref<32xi32, #tpu.memory_space<smem>>
    %5 = arith.index_cast %4 : i32 to index
    %c0 = arith.constant 0 : index
    %6 = vector.load %arg2[%5, %c0] : memref<25x24xf32, #tpu.memory_space<vmem>>, vector<1x24xf32>
    %c0_0 = arith.constant 0 : index
    %c0_1 = arith.constant 0 : index
    %7 = vector.load %arg5[%c0_0, %c0_1] : memref<32x24xf32, #tpu.memory_space<vmem>>, vector<1x24xf32>
    tpu.vector_store %arg5[%c0_0, %c0_1], %6 {strides = array<i32>} : memref<32x24xf32, #tpu.memory_space<vmem>>, vector<1x24xf32>,
    %c1_i32 = arith.constant 1 : i32
    %8 = arith.addi %0, %c1_i32 : i32
    %c31_i32_2 = arith.constant 31 : i32
    %9 = arith.minsi %8, %c31_i32_2 : i32
    %10 = arith.index_cast %9 : i32 to index
    %11 = memref.load %arg1[%10] : memref<32xi32, #tpu.memory_space<smem>>
    %12 = arith.index_cast %11 : i32 to index
    %c0_3 = arith.constant 0 : index
    %13 = vector.load %arg2[%12, %c0_3] : memref<25x24xf32, #tpu.memory_space<vmem>>, vector<1x24xf32>
    %c1 = arith.constant 1 : index
    %c0_4 = arith.constant 0 : index
    %14 = vector.load %arg5[%c1, %c0_4] : memref<32x24xf32, #tpu.memory_space<vmem>>, vector<1x24xf32>
    tpu.vector_store %arg5[%c1, %c0_4], %13 {strides = array<i32>} : memref<32x24xf32, #tpu.memory_space<vmem>>, vector<1x24xf32>,
    %c2_i32 = arith.constant 2 : i32
    %15 = arith.addi %0, %c2_i32 : i32
    %c31_i32_5 = arith.constant 31 : i32
    %16 = arith.minsi %15, %c31_i32_5 : i32
    %17 = arith.index_cast %16 : i32 to index
    %18 = memref.load %arg1[%17] : memref<32xi32, #tpu.memory_space<smem>>
    %19 = arith.index_cast %18 : i32 to index
    %c0_6 = arith.constant 0 : index
    %20 = vector.load %arg2[%19, %c0_6] : memref<25x24xf32, #tpu.memory_space<vmem>>, vector<1x24xf32>
    %c2 = arith.constant 2 : index
    %c0_7 = arith.constant 0 : index
    %21 = vector.load %arg5[%c2, %c0_7] : memref<32x24xf32, #tpu.memory_space<vmem>>, vector<1x24xf32>
    tpu.vector_store %arg5[%c2, %c0_7], %20 {strides = array<i32>} : memref<32x24xf32, #tpu.memory_space<vmem>>, vector<1x24xf32>,
    %c3_i32 = arith.constant 3 : i32
    %22 = arith.addi %0, %c3_i32 : i32
    %c31_i32_8 = arith.constant 31 : i32
    %23 = arith.minsi %22, %c31_i32_8 : i32
    %24 = arith.index_cast %23 : i32 to index
    %25 = memref.load %arg1[%24] : memref<32xi32, #tpu.memory_space<smem>>
    %26 = arith.index_cast %25 : i32 to index
    %c0_9 = arith.constant 0 : index
    %27 = vector.load %arg2[%26, %c0_9] : memref<25x24xf32, #tpu.memory_space<vmem>>, vector<1x24xf32>
    %c3 = arith.constant 3 : index
    %c0_10 = arith.constant 0 : index
    %28 = vector.load %arg5[%c3, %c0_10] : memref<32x24xf32, #tpu.memory_space<vmem>>, vector<1x24xf32>
    tpu.vector_store %arg5[%c3, %c0_10], %27 {strides = array<i32>} : memref<32x24xf32, #tpu.memory_space<vmem>>, vector<1x24xf32>,
    %c4_i32 = arith.constant 4 : i32
    %29 = arith.addi %0, %c4_i32 : i32
    %c31_i32_11 = arith.constant 31 : i32
    %30 = arith.minsi %29, %c31_i32_11 : i32
    %31 = arith.index_cast %30 : i32 to index
    %32 = memref.load %arg1[%31] : memref<32xi32, #tpu.memory_space<smem>>
    %33 = arith.index_cast %32 : i32 to index
    %c0_12 = arith.constant 0 : index
    %34 = vector.load %arg2[%33, %c0_12] : memref<25x24xf32, #tpu.memory_space<vmem>>, vector<1x24xf32>
    %c4 = arith.constant 4 : index
    %c0_13 = arith.constant 0 : index
    %35 = vector.load %arg5[%c4, %c0_13] : memref<32x24xf32, #tpu.memory_space<vmem>>, vector<1x24xf32>
    tpu.vector_store %arg5[%c4, %c0_13], %34 {strides = array<i32>} : memref<32x24xf32, #tpu.memory_space<vmem>>, vector<1x24xf32>,
    %c5_i32 = arith.constant 5 : i32
    %36 = arith.addi %0, %c5_i32 : i32
    %c31_i32_14 = arith.constant 31 : i32
    %37 = arith.minsi %36, %c31_i32_14 : i32
    %38 = arith.index_cast %37 : i32 to index
    %39 = memref.load %arg1[%38] : memref<32xi32, #tpu.memory_space<smem>>
    %40 = arith.index_cast %39 : i32 to index
    %c0_15 = arith.constant 0 : index
    %41 = vector.load %arg2[%40, %c0_15] : memref<25x24xf32, #tpu.memory_space<vmem>>, vector<1x24xf32>
    %c5 = arith.constant 5 : index
    %c0_16 = arith.constant 0 : index
    %42 = vector.load %arg5[%c5, %c0_16] : memref<32x24xf32, #tpu.memory_space<vmem>>, vector<1x24xf32>
    tpu.vector_store %arg5[%c5, %c0_16], %41 {strides = array<i32>} : memref<32x24xf32, #tpu.memory_space<vmem>>, vector<1x24xf32>,
    %c6_i32 = arith.constant 6 : i32
    %43 = arith.addi %0, %c6_i32 : i32
    %c31_i32_17 = arith.constant 31 : i32
    %44 = arith.minsi %43, %c31_i32_17 : i32
    %45 = arith.index_cast %44 : i32 to index
    %46 = memref.load %arg1[%45] : memref<32xi32, #tpu.memory_space<smem>>
    %47 = arith.index_cast %46 : i32 to index
    %c0_18 = arith.constant 0 : index
    %48 = vector.load %arg2[%47, %c0_18] : memref<25x24xf32, #tpu.memory_space<vmem>>, vector<1x24xf32>
    %c6 = arith.constant 6 : index
    %c0_19 = arith.constant 0 : index
    %49 = vector.load %arg5[%c6, %c0_19] : memref<32x24xf32, #tpu.memory_space<vmem>>, vector<1x24xf32>
    tpu.vector_store %arg5[%c6, %c0_19], %48 {strides = array<i32>} : memref<32x24xf32, #tpu.memory_space<vmem>>, vector<1x24xf32>,
    %c7_i32 = arith.constant 7 : i32
    %50 = arith.addi %0, %c7_i32 : i32
    %c31_i32_20 = arith.constant 31 : i32
    %51 = arith.minsi %50, %c31_i32_20 : i32
    %52 = arith.index_cast %51 : i32 to index
    %53 = memref.load %arg1[%52] : memref<32xi32, #tpu.memory_space<smem>>
    %54 = arith.index_cast %53 : i32 to index
    %c0_21 = arith.constant 0 : index
    %55 = vector.load %arg2[%54, %c0_21] : memref<25x24xf32, #tpu.memory_space<vmem>>, vector<1x24xf32>
    %c7 = arith.constant 7 : index
    %c0_22 = arith.constant 0 : index
    %56 = vector.load %arg5[%c7, %c0_22] : memref<32x24xf32, #tpu.memory_space<vmem>>, vector<1x24xf32>
    tpu.vector_store %arg5[%c7, %c0_22], %55 {strides = array<i32>} : memref<32x24xf32, #tpu.memory_space<vmem>>, vector<1x24xf32>,
    %c8_i32 = arith.constant 8 : i32
    %57 = arith.addi %0, %c8_i32 : i32
    %c31_i32_23 = arith.constant 31 : i32
    %58 = arith.minsi %57, %c31_i32_23 : i32
    %59 = arith.index_cast %58 : i32 to index
    %60 = memref.load %arg1[%59] : memref<32xi32, #tpu.memory_space<smem>>
    %61 = arith.index_cast %60 : i32 to index
    %c0_24 = arith.constant 0 : index
    %62 = vector.load %arg2[%61, %c0_24] : memref<25x24xf32, #tpu.memory_space<vmem>>, vector<1x24xf32>
    %c8 = arith.constant 8 : index
    %c0_25 = arith.constant 0 : index
    %63 = vector.load %arg5[%c8, %c0_25] : memref<32x24xf32, #tpu.memory_space<vmem>>, vector<1x24xf32>
    tpu.vector_store %arg5[%c8, %c0_25], %62 {strides = array<i32>} : memref<32x24xf32, #tpu.memory_space<vmem>>, vector<1x24xf32>,
    %c9_i32 = arith.constant 9 : i32
    %64 = arith.addi %0, %c9_i32 : i32
    %c31_i32_26 = arith.constant 31 : i32
    %65 = arith.minsi %64, %c31_i32_26 : i32
    %66 = arith.index_cast %65 : i32 to index
    %67 = memref.load %arg1[%66] : memref<32xi32, #tpu.memory_space<smem>>
    %68 = arith.index_cast %67 : i32 to index
    %c0_27 = arith.constant 0 : index
    %69 = vector.load %arg2[%68, %c0_27] : memref<25x24xf32, #tpu.memory_space<vmem>>, vector<1x24xf32>
    %c9 = arith.constant 9 : index
    %c0_28 = arith.constant 0 : index
    %70 = vector.load %arg5[%c9, %c0_28] : memref<32x24xf32, #tpu.memory_space<vmem>>, vector<1x24xf32>
    tpu.vector_store %arg5[%c9, %c0_28], %69 {strides = array<i32>} : memref<32x24xf32, #tpu.memory_space<vmem>>, vector<1x24xf32>,
    %c10_i32 = arith.constant 10 : i32
    %71 = arith.addi %0, %c10_i32 : i32
    %c31_i32_29 = arith.constant 31 : i32
    %72 = arith.minsi %71, %c31_i32_29 : i32
    %73 = arith.index_cast %72 : i32 to index
    %74 = memref.load %arg1[%73] : memref<32xi32, #tpu.memory_space<smem>>
    %75 = arith.index_cast %74 : i32 to index
    %c0_30 = arith.constant 0 : index
    %76 = vector.load %arg2[%75, %c0_30] : memref<25x24xf32, #tpu.memory_space<vmem>>, vector<1x24xf32>
    %c10 = arith.constant 10 : index
    %c0_31 = arith.constant 0 : index
    %77 = vector.load %arg5[%c10, %c0_31] : memref<32x24xf32, #tpu.memory_space<vmem>>, vector<1x24xf32>
    tpu.vector_store %arg5[%c10, %c0_31], %76 {strides = array<i32>} : memref<32x24xf32, #tpu.memory_space<vmem>>, vector<1x24xf32>,
    %c11_i32 = arith.constant 11 : i32
    %78 = arith.addi %0, %c11_i32 : i32
    %c31_i32_32 = arith.constant 31 : i32
    %79 = arith.minsi %78, %c31_i32_32 : i32
    %80 = arith.index_cast %79 : i32 to index
    %81 = memref.load %arg1[%80] : memref<32xi32, #tpu.memory_space<smem>>
    %82 = arith.index_cast %81 : i32 to index
    %c0_33 = arith.constant 0 : index
    %83 = vector.load %arg2[%82, %c0_33] : memref<25x24xf32, #tpu.memory_space<vmem>>, vector<1x24xf32>
    %c11 = arith.constant 11 : index
    %c0_34 = arith.constant 0 : index
    %84 = vector.load %arg5[%c11, %c0_34] : memref<32x24xf32, #tpu.memory_space<vmem>>, vector<1x24xf32>
    tpu.vector_store %arg5[%c11, %c0_34], %83 {strides = array<i32>} : memref<32x24xf32, #tpu.memory_space<vmem>>, vector<1x24xf32>,
    %c12_i32 = arith.constant 12 : i32
    %85 = arith.addi %0, %c12_i32 : i32
    %c31_i32_35 = arith.constant 31 : i32
    %86 = arith.minsi %85, %c31_i32_35 : i32
    %87 = arith.index_cast %86 : i32 to index
    %88 = memref.load %arg1[%87] : memref<32xi32, #tpu.memory_space<smem>>
    %89 = arith.index_cast %88 : i32 to index
    %c0_36 = arith.constant 0 : index
    %90 = vector.load %arg2[%89, %c0_36] : memref<25x24xf32, #tpu.memory_space<vmem>>, vector<1x24xf32>
    %c12 = arith.constant 12 : index
    %c0_37 = arith.constant 0 : index
    %91 = vector.load %arg5[%c12, %c0_37] : memref<32x24xf32, #tpu.memory_space<vmem>>, vector<1x24xf32>
    tpu.vector_store %arg5[%c12, %c0_37], %90 {strides = array<i32>} : memref<32x24xf32, #tpu.memory_space<vmem>>, vector<1x24xf32>,
    %c13_i32 = arith.constant 13 : i32
    %92 = arith.addi %0, %c13_i32 : i32
    %c31_i32_38 = arith.constant 31 : i32
    %93 = arith.minsi %92, %c31_i32_38 : i32
    %94 = arith.index_cast %93 : i32 to index
    %95 = memref.load %arg1[%94] : memref<32xi32, #tpu.memory_space<smem>>
    %96 = arith.index_cast %95 : i32 to index
    %c0_39 = arith.constant 0 : index
    %97 = vector.load %arg2[%96, %c0_39] : memref<25x24xf32, #tpu.memory_space<vmem>>, vector<1x24xf32>
    %c13 = arith.constant 13 : index
    %c0_40 = arith.constant 0 : index
    %98 = vector.load %arg5[%c13, %c0_40] : memref<32x24xf32, #tpu.memory_space<vmem>>, vector<1x24xf32>
    tpu.vector_store %arg5[%c13, %c0_40], %97 {strides = array<i32>} : memref<32x24xf32, #tpu.memory_space<vmem>>, vector<1x24xf32>,
    %c14_i32 = arith.constant 14 : i32
    %99 = arith.addi %0, %c14_i32 : i32
    %c31_i32_41 = arith.constant 31 : i32
    %100 = arith.minsi %99, %c31_i32_41 : i32
    %101 = arith.index_cast %100 : i32 to index
    %102 = memref.load %arg1[%101] : memref<32xi32, #tpu.memory_space<smem>>
    %103 = arith.index_cast %102 : i32 to index
    %c0_42 = arith.constant 0 : index
    %104 = vector.load %arg2[%103, %c0_42] : memref<25x24xf32, #tpu.memory_space<vmem>>, vector<1x24xf32>
    %c14 = arith.constant 14 : index
    %c0_43 = arith.constant 0 : index
    %105 = vector.load %arg5[%c14, %c0_43] : memref<32x24xf32, #tpu.memory_space<vmem>>, vector<1x24xf32>
    tpu.vector_store %arg5[%c14, %c0_43], %104 {strides = array<i32>} : memref<32x24xf32, #tpu.memory_space<vmem>>, vector<1x24xf32>,
    %c15_i32 = arith.constant 15 : i32
    %106 = arith.addi %0, %c15_i32 : i32
    %c31_i32_44 = arith.constant 31 : i32
    %107 = arith.minsi %106, %c31_i32_44 : i32
    %108 = arith.index_cast %107 : i32 to index
    %109 = memref.load %arg1[%108] : memref<32xi32, #tpu.memory_space<smem>>
    %110 = arith.index_cast %109 : i32 to index
    %c0_45 = arith.constant 0 : index
    %111 = vector.load %arg2[%110, %c0_45] : memref<25x24xf32, #tpu.memory_space<vmem>>, vector<1x24xf32>
    %c15 = arith.constant 15 : index
    %c0_46 = arith.constant 0 : index
    %112 = vector.load %arg5[%c15, %c0_46] : memref<32x24xf32, #tpu.memory_space<vmem>>, vector<1x24xf32>
    tpu.vector_store %arg5[%c15, %c0_46], %111 {strides = array<i32>} : memref<32x24xf32, #tpu.memory_space<vmem>>, vector<1x24xf32>,
    %c16_i32 = arith.constant 16 : i32
    %113 = arith.addi %0, %c16_i32 : i32
    %c31_i32_47 = arith.constant 31 : i32
    %114 = arith.minsi %113, %c31_i32_47 : i32
    %115 = arith.index_cast %114 : i32 to index
    %116 = memref.load %arg1[%115] : memref<32xi32, #tpu.memory_space<smem>>
    %117 = arith.index_cast %116 : i32 to index
    %c0_48 = arith.constant 0 : index
    %118 = vector.load %arg2[%117, %c0_48] : memref<25x24xf32, #tpu.memory_space<vmem>>, vector<1x24xf32>
    %c16 = arith.constant 16 : index
    %c0_49 = arith.constant 0 : index
    %119 = vector.load %arg5[%c16, %c0_49] : memref<32x24xf32, #tpu.memory_space<vmem>>, vector<1x24xf32>
    tpu.vector_store %arg5[%c16, %c0_49], %118 {strides = array<i32>} : memref<32x24xf32, #tpu.memory_space<vmem>>, vector<1x24xf32>,
    %c17_i32 = arith.constant 17 : i32
    %120 = arith.addi %0, %c17_i32 : i32
    %c31_i32_50 = arith.constant 31 : i32
    %121 = arith.minsi %120, %c31_i32_50 : i32
    %122 = arith.index_cast %121 : i32 to index
    %123 = memref.load %arg1[%122] : memref<32xi32, #tpu.memory_space<smem>>
    %124 = arith.index_cast %123 : i32 to index
    %c0_51 = arith.constant 0 : index
    %125 = vector.load %arg2[%124, %c0_51] : memref<25x24xf32, #tpu.memory_space<vmem>>, vector<1x24xf32>
    %c17 = arith.constant 17 : index
    %c0_52 = arith.constant 0 : index
    %126 = vector.load %arg5[%c17, %c0_52] : memref<32x24xf32, #tpu.memory_space<vmem>>, vector<1x24xf32>
    tpu.vector_store %arg5[%c17, %c0_52], %125 {strides = array<i32>} : memref<32x24xf32, #tpu.memory_space<vmem>>, vector<1x24xf32>,
    %c18_i32 = arith.constant 18 : i32
    %127 = arith.addi %0, %c18_i32 : i32
    %c31_i32_53 = arith.constant 31 : i32
    %128 = arith.minsi %127, %c31_i32_53 : i32
    %129 = arith.index_cast %128 : i32 to index
    %130 = memref.load %arg1[%129] : memref<32xi32, #tpu.memory_space<smem>>
    %131 = arith.index_cast %130 : i32 to index
    %c0_54 = arith.constant 0 : index
    %132 = vector.load %arg2[%131, %c0_54] : memref<25x24xf32, #tpu.memory_space<vmem>>, vector<1x24xf32>
    %c18 = arith.constant 18 : index
    %c0_55 = arith.constant 0 : index
    %133 = vector.load %arg5[%c18, %c0_55] : memref<32x24xf32, #tpu.memory_space<vmem>>, vector<1x24xf32>
    tpu.vector_store %arg5[%c18, %c0_55], %132 {strides = array<i32>} : memref<32x24xf32, #tpu.memory_space<vmem>>, vector<1x24xf32>,
    %c19_i32 = arith.constant 19 : i32
    %134 = arith.addi %0, %c19_i32 : i32
    %c31_i32_56 = arith.constant 31 : i32
    %135 = arith.minsi %134, %c31_i32_56 : i32
    %136 = arith.index_cast %135 : i32 to index
    %137 = memref.load %arg1[%136] : memref<32xi32, #tpu.memory_space<smem>>
    %138 = arith.index_cast %137 : i32 to index
    %c0_57 = arith.constant 0 : index
    %139 = vector.load %arg2[%138, %c0_57] : memref<25x24xf32, #tpu.memory_space<vmem>>, vector<1x24xf32>
    %c19 = arith.constant 19 : index
    %c0_58 = arith.constant 0 : index
    %140 = vector.load %arg5[%c19, %c0_58] : memref<32x24xf32, #tpu.memory_space<vmem>>, vector<1x24xf32>
    tpu.vector_store %arg5[%c19, %c0_58], %139 {strides = array<i32>} : memref<32x24xf32, #tpu.memory_space<vmem>>, vector<1x24xf32>,
    %c20_i32 = arith.constant 20 : i32
    %141 = arith.addi %0, %c20_i32 : i32
    %c31_i32_59 = arith.constant 31 : i32
    %142 = arith.minsi %141, %c31_i32_59 : i32
    %143 = arith.index_cast %142 : i32 to index
    %144 = memref.load %arg1[%143] : memref<32xi32, #tpu.memory_space<smem>>
    %145 = arith.index_cast %144 : i32 to index
    %c0_60 = arith.constant 0 : index
    %146 = vector.load %arg2[%145, %c0_60] : memref<25x24xf32, #tpu.memory_space<vmem>>, vector<1x24xf32>
    %c20 = arith.constant 20 : index
    %c0_61 = arith.constant 0 : index
    %147 = vector.load %arg5[%c20, %c0_61] : memref<32x24xf32, #tpu.memory_space<vmem>>, vector<1x24xf32>
    tpu.vector_store %arg5[%c20, %c0_61], %146 {strides = array<i32>} : memref<32x24xf32, #tpu.memory_space<vmem>>, vector<1x24xf32>,
    %c21_i32 = arith.constant 21 : i32
    %148 = arith.addi %0, %c21_i32 : i32
    %c31_i32_62 = arith.constant 31 : i32
    %149 = arith.minsi %148, %c31_i32_62 : i32
    %150 = arith.index_cast %149 : i32 to index
    %151 = memref.load %arg1[%150] : memref<32xi32, #tpu.memory_space<smem>>
    %152 = arith.index_cast %151 : i32 to index
    %c0_63 = arith.constant 0 : index
    %153 = vector.load %arg2[%152, %c0_63] : memref<25x24xf32, #tpu.memory_space<vmem>>, vector<1x24xf32>
    %c21 = arith.constant 21 : index
    %c0_64 = arith.constant 0 : index
    %154 = vector.load %arg5[%c21, %c0_64] : memref<32x24xf32, #tpu.memory_space<vmem>>, vector<1x24xf32>
    tpu.vector_store %arg5[%c21, %c0_64], %153 {strides = array<i32>} : memref<32x24xf32, #tpu.memory_space<vmem>>, vector<1x24xf32>,
    %c22_i32 = arith.constant 22 : i32
    %155 = arith.addi %0, %c22_i32 : i32
    %c31_i32_65 = arith.constant 31 : i32
    %156 = arith.minsi %155, %c31_i32_65 : i32
    %157 = arith.index_cast %156 : i32 to index
    %158 = memref.load %arg1[%157] : memref<32xi32, #tpu.memory_space<smem>>
    %159 = arith.index_cast %158 : i32 to index
    %c0_66 = arith.constant 0 : index
    %160 = vector.load %arg2[%159, %c0_66] : memref<25x24xf32, #tpu.memory_space<vmem>>, vector<1x24xf32>
    %c22 = arith.constant 22 : index
    %c0_67 = arith.constant 0 : index
    %161 = vector.load %arg5[%c22, %c0_67] : memref<32x24xf32, #tpu.memory_space<vmem>>, vector<1x24xf32>
    tpu.vector_store %arg5[%c22, %c0_67], %160 {strides = array<i32>} : memref<32x24xf32, #tpu.memory_space<vmem>>, vector<1x24xf32>,
    %c23_i32 = arith.constant 23 : i32
    %162 = arith.addi %0, %c23_i32 : i32
    %c31_i32_68 = arith.constant 31 : i32
    %163 = arith.minsi %162, %c31_i32_68 : i32
    %164 = arith.index_cast %163 : i32 to index
    %165 = memref.load %arg1[%164] : memref<32xi32, #tpu.memory_space<smem>>
    %166 = arith.index_cast %165 : i32 to index
    %c0_69 = arith.constant 0 : index
    %167 = vector.load %arg2[%166, %c0_69] : memref<25x24xf32, #tpu.memory_space<vmem>>, vector<1x24xf32>
    %c23 = arith.constant 23 : index
    %c0_70 = arith.constant 0 : index
    %168 = vector.load %arg5[%c23, %c0_70] : memref<32x24xf32, #tpu.memory_space<vmem>>, vector<1x24xf32>
    tpu.vector_store %arg5[%c23, %c0_70], %167 {strides = array<i32>} : memref<32x24xf32, #tpu.memory_space<vmem>>, vector<1x24xf32>,
    %c24_i32 = arith.constant 24 : i32
    %169 = arith.addi %0, %c24_i32 : i32
    %c31_i32_71 = arith.constant 31 : i32
    %170 = arith.minsi %169, %c31_i32_71 : i32
    %171 = arith.index_cast %170 : i32 to index
    %172 = memref.load %arg1[%171] : memref<32xi32, #tpu.memory_space<smem>>
    %173 = arith.index_cast %172 : i32 to index
    %c0_72 = arith.constant 0 : index
    %174 = vector.load %arg2[%173, %c0_72] : memref<25x24xf32, #tpu.memory_space<vmem>>, vector<1x24xf32>
    %c24 = arith.constant 24 : index
    %c0_73 = arith.constant 0 : index
    %175 = vector.load %arg5[%c24, %c0_73] : memref<32x24xf32, #tpu.memory_space<vmem>>, vector<1x24xf32>
    tpu.vector_store %arg5[%c24, %c0_73], %174 {strides = array<i32>} : memref<32x24xf32, #tpu.memory_space<vmem>>, vector<1x24xf32>,
    %c25_i32 = arith.constant 25 : i32
    %176 = arith.addi %0, %c25_i32 : i32
    %c31_i32_74 = arith.constant 31 : i32
    %177 = arith.minsi %176, %c31_i32_74 : i32
    %178 = arith.index_cast %177 : i32 to index
    %179 = memref.load %arg1[%178] : memref<32xi32, #tpu.memory_space<smem>>
    %180 = arith.index_cast %179 : i32 to index
    %c0_75 = arith.constant 0 : index
    %181 = vector.load %arg2[%180, %c0_75] : memref<25x24xf32, #tpu.memory_space<vmem>>, vector<1x24xf32>
    %c25 = arith.constant 25 : index
    %c0_76 = arith.constant 0 : index
    %182 = vector.load %arg5[%c25, %c0_76] : memref<32x24xf32, #tpu.memory_space<vmem>>, vector<1x24xf32>
    tpu.vector_store %arg5[%c25, %c0_76], %181 {strides = array<i32>} : memref<32x24xf32, #tpu.memory_space<vmem>>, vector<1x24xf32>,
    %c26_i32 = arith.constant 26 : i32
    %183 = arith.addi %0, %c26_i32 : i32
    %c31_i32_77 = arith.constant 31 : i32
    %184 = arith.minsi %183, %c31_i32_77 : i32
    %185 = arith.index_cast %184 : i32 to index
    %186 = memref.load %arg1[%185] : memref<32xi32, #tpu.memory_space<smem>>
    %187 = arith.index_cast %186 : i32 to index
    %c0_78 = arith.constant 0 : index
    %188 = vector.load %arg2[%187, %c0_78] : memref<25x24xf32, #tpu.memory_space<vmem>>, vector<1x24xf32>
    %c26 = arith.constant 26 : index
    %c0_79 = arith.constant 0 : index
    %189 = vector.load %arg5[%c26, %c0_79] : memref<32x24xf32, #tpu.memory_space<vmem>>, vector<1x24xf32>
    tpu.vector_store %arg5[%c26, %c0_79], %188 {strides = array<i32>} : memref<32x24xf32, #tpu.memory_space<vmem>>, vector<1x24xf32>,
    %c27_i32 = arith.constant 27 : i32
    %190 = arith.addi %0, %c27_i32 : i32
    %c31_i32_80 = arith.constant 31 : i32
    %191 = arith.minsi %190, %c31_i32_80 : i32
    %192 = arith.index_cast %191 : i32 to index
    %193 = memref.load %arg1[%192] : memref<32xi32, #tpu.memory_space<smem>>
    %194 = arith.index_cast %193 : i32 to index
    %c0_81 = arith.constant 0 : index
    %195 = vector.load %arg2[%194, %c0_81] : memref<25x24xf32, #tpu.memory_space<vmem>>, vector<1x24xf32>
    %c27 = arith.constant 27 : index
    %c0_82 = arith.constant 0 : index
    %196 = vector.load %arg5[%c27, %c0_82] : memref<32x24xf32, #tpu.memory_space<vmem>>, vector<1x24xf32>
    tpu.vector_store %arg5[%c27, %c0_82], %195 {strides = array<i32>} : memref<32x24xf32, #tpu.memory_space<vmem>>, vector<1x24xf32>,
    %c28_i32 = arith.constant 28 : i32
    %197 = arith.addi %0, %c28_i32 : i32
    %c31_i32_83 = arith.constant 31 : i32
    %198 = arith.minsi %197, %c31_i32_83 : i32
    %199 = arith.index_cast %198 : i32 to index
    %200 = memref.load %arg1[%199] : memref<32xi32, #tpu.memory_space<smem>>
    %201 = arith.index_cast %200 : i32 to index
    %c0_84 = arith.constant 0 : index
    %202 = vector.load %arg2[%201, %c0_84] : memref<25x24xf32, #tpu.memory_space<vmem>>, vector<1x24xf32>
    %c28 = arith.constant 28 : index
    %c0_85 = arith.constant 0 : index
    %203 = vector.load %arg5[%c28, %c0_85] : memref<32x24xf32, #tpu.memory_space<vmem>>, vector<1x24xf32>
    tpu.vector_store %arg5[%c28, %c0_85], %202 {strides = array<i32>} : memref<32x24xf32, #tpu.memory_space<vmem>>, vector<1x24xf32>,
    %c29_i32 = arith.constant 29 : i32
    %204 = arith.addi %0, %c29_i32 : i32
    %c31_i32_86 = arith.constant 31 : i32
    %205 = arith.minsi %204, %c31_i32_86 : i32
    %206 = arith.index_cast %205 : i32 to index
    %207 = memref.load %arg1[%206] : memref<32xi32, #tpu.memory_space<smem>>
    %208 = arith.index_cast %207 : i32 to index
    %c0_87 = arith.constant 0 : index
    %209 = vector.load %arg2[%208, %c0_87] : memref<25x24xf32, #tpu.memory_space<vmem>>, vector<1x24xf32>
    %c29 = arith.constant 29 : index
    %c0_88 = arith.constant 0 : index
    %210 = vector.load %arg5[%c29, %c0_88] : memref<32x24xf32, #tpu.memory_space<vmem>>, vector<1x24xf32>
    tpu.vector_store %arg5[%c29, %c0_88], %209 {strides = array<i32>} : memref<32x24xf32, #tpu.memory_space<vmem>>, vector<1x24xf32>,
    %c30_i32 = arith.constant 30 : i32
    %211 = arith.addi %0, %c30_i32 : i32
    %c31_i32_89 = arith.constant 31 : i32
    %212 = arith.minsi %211, %c31_i32_89 : i32
    %213 = arith.index_cast %212 : i32 to index
    %214 = memref.load %arg1[%213] : memref<32xi32, #tpu.memory_space<smem>>
    %215 = arith.index_cast %214 : i32 to index
    %c0_90 = arith.constant 0 : index
    %216 = vector.load %arg2[%215, %c0_90] : memref<25x24xf32, #tpu.memory_space<vmem>>, vector<1x24xf32>
    %c30 = arith.constant 30 : index
    %c0_91 = arith.constant 0 : index
    %217 = vector.load %arg5[%c30, %c0_91] : memref<32x24xf32, #tpu.memory_space<vmem>>, vector<1x24xf32>
    tpu.vector_store %arg5[%c30, %c0_91], %216 {strides = array<i32>} : memref<32x24xf32, #tpu.memory_space<vmem>>, vector<1x24xf32>,
    %c31_i32_92 = arith.constant 31 : i32
    %218 = arith.addi %0, %c31_i32_92 : i32
    %c31_i32_93 = arith.constant 31 : i32
    %219 = arith.minsi %218, %c31_i32_93 : i32
    %220 = arith.index_cast %219 : i32 to index
    %221 = memref.load %arg1[%220] : memref<32xi32, #tpu.memory_space<smem>>
    %222 = arith.index_cast %221 : i32 to index
    %c0_94 = arith.constant 0 : index
    %223 = vector.load %arg2[%222, %c0_94] : memref<25x24xf32, #tpu.memory_space<vmem>>, vector<1x24xf32>
    %c31 = arith.constant 31 : index
    %c0_95 = arith.constant 0 : index
    %224 = vector.load %arg5[%c31, %c0_95] : memref<32x24xf32, #tpu.memory_space<vmem>>, vector<1x24xf32>
    tpu.vector_store %arg5[%c31, %c0_95], %223 {strides = array<i32>} : memref<32x24xf32, #tpu.memory_space<vmem>>, vector<1x24xf32>,
    %c0_96 = arith.constant 0 : index
    %c0_97 = arith.constant 0 : index
    %225 = vector.load %arg5[%c0_96, %c0_97] : memref<32x24xf32, #tpu.memory_space<vmem>>, vector<32x24xf32>
    %c0_98 = arith.constant 0 : index
    %c0_99 = arith.constant 0 : index
    %226 = vector.load %arg3[%c0_98, %c0_99] : memref<32x24xf32, #tpu.memory_space<vmem>>, vector<32x24xf32>
    %c0_100 = arith.constant 0 : index
    %c0_101 = arith.constant 0 : index
    %227 = vector.load %arg4[%c0_100, %c0_101] : memref<32x24xf32, #tpu.memory_space<vmem>>, vector<32x24xf32>
    %228 = arith.mulf %225, %225 : vector<32x24xf32>
    %cst = arith.constant dense<0.000000e+00> : vector<32xf32>
    %229 = vector.multi_reduction <add>, %228, %cst [1] : vector<32x24xf32> to vector<32xf32>
    %230 = vector.shape_cast %229 : vector<32xf32> to vector<32x1xf32>
    %231 = math.sqrt %230 : vector<32x1xf32>
    %cst_102 = arith.constant 1.000000e+00 : f32
    %232 = vector.broadcast %cst_102 : f32 to vector<32x1xf32>
    %233 = arith.cmpf ogt, %231, %232 : vector<32x1xf32>
    %cst_103 = arith.constant 1.000000e-07 : f32
    %234 = vector.broadcast %cst_103 : f32 to vector<32x1xf32>
    %235 = arith.addf %231, %234 : vector<32x1xf32>
    %cst_104 = arith.constant 1.000000e+00 : f32
    %236 = vector.broadcast %cst_104 : f32 to vector<32x1xf32>
    %237 = arith.divf %236, %235 : vector<32x1xf32>
    %cst_105 = arith.constant 1.000000e+00 : f32
    %238 = vector.broadcast %cst_105 : f32 to vector<32x1xf32>
    %239 = arith.select %233, %237, %238 : vector<32x1xi1>, vector<32x1xf32>
    %240 = vector.broadcast %239 : vector<32x1xf32> to vector<32x24xf32>
    %241 = arith.mulf %225, %240 : vector<32x24xf32>
    %242 = arith.mulf %241, %226 : vector<32x24xf32>
    %243 = arith.addf %242, %227 : vector<32x24xf32>
    %c0_106 = arith.constant 0 : index
    %c0_107 = arith.constant 0 : index
    %244 = vector.load %arg5[%c0_106, %c0_107] : memref<32x24xf32, #tpu.memory_space<vmem>>, vector<32x24xf32>
    tpu.vector_store %arg5[%c0_106, %c0_107], %243 {strides = array<i32>} : memref<32x24xf32, #tpu.memory_space<vmem>>, vector<32x24xf32>,
    return
  }
  func.func @transform_0(%arg0: i32, %arg1: memref<32xi32, #tpu.memory_space<smem>>) -> (i32, i32) {
    %c0_i32 = arith.constant 0 : i32
    %c0_i32_0 = arith.constant 0 : i32
    %c0_i32_1 = arith.constant 0 : i32
    return %c0_i32, %c0_i32_0 : i32, i32
  }
  func.func @transform_1(%arg0: i32, %arg1: memref<32xi32, #tpu.memory_space<smem>>) -> (i32, i32) {
    %c0_i32 = arith.constant 0 : i32
    %c0_i32_0 = arith.constant 0 : i32
    %c0_i32_1 = arith.constant 0 : i32
    return %c0_i32, %c0_i32_0 : i32, i32
  }
  func.func @transform_2(%arg0: i32, %arg1: memref<32xi32, #tpu.memory_space<smem>>) -> (i32, i32) {
    %c0_i32 = arith.constant 0 : i32
    %c0_i32_0 = arith.constant 0 : i32
    %c0_i32_1 = arith.constant 0 : i32
    return %c0_i32, %c0_i32_0 : i32, i32
  }
  func.func @transform_3(%arg0: i32, %arg1: memref<32xi32, #tpu.memory_space<smem>>) -> (i32, i32) {
    %c0_i32 = arith.constant 0 : i32
    %c0_i32_0 = arith.constant 0 : i32
    return %arg0, %c0_i32 : i32, i32
  }
}

</mosaic_0001>

<llo_original>
// kernel: tpu_custom_call.1
$region0: #{tpu_custom_call.1}
  #allocation0 [shape = 'u32[]', space=smem, size = 0x4, offset = 0x4, fixed_abs, tag = 'smem constant byte address 0x4 - core index']
  #allocation1 [shape = 'u32[72,128]{1,0:T(1,128)}', space=vmem, size = 0x9000, scoped, tag = 'internal scratch']
  #allocation2 [shape = 's32[1]{0}', space=sflag, size = 0x4, scoped, tag = 'scoped memory for tpu_custom_call.1']
  #allocation3 [shape = 'u8[512]{0}', space=smem, size = 0x200, scoped, tag = 'prefetched SMEM operand 0']
  %s0 = inlined_call_operand.vmem [shape: s32[32], index: 0, kind: input, shape index: {}]
  %s1 = inlined_call_operand.vmem [shape: f32[25,24], index: 1, kind: input, shape index: {}]
  %s2 = inlined_call_operand.vmem [shape: f32[32,24], index: 2, kind: input, shape index: {}]
  %s3 = inlined_call_operand.vmem [shape: f32[32,24], index: 3, kind: input, shape index: {}]
  %s4 = inlined_call_operand.vmem [shape: f32[32,24], index: 4, kind: output, shape index: {}]
  %s5 = sld [smem:[#allocation0]]
  $region22: #{tpu_custom_call.1} parent=0
    _
  %s7 = ssub.s32 1, %s5
  %s8 = scalar_select 0, %s7, %s5
  %s10 = sshll.u32 %s0, 4
  %s11 = int_to_ptr.vmem [resolvable:$true] %s10
  %13 = dma.vmem_to_smem %s11, 16, [#allocation3], [#allocation2]
  %15 = dma.done [#allocation2], 16
  %16 = sfence
  // Predicated region
  $region2: #{tpu_custom_call.1} parent=0 // pred_check
    _
  $region3: #{tpu_custom_call.1} parent=0 // pred_check_branch
    %18 = sbr.rel (0) target = $region5
  $region4: #{tpu_custom_call.1} parent=0 // pred_region
    _
  $region5: #{tpu_custom_call.1} parent=0 // pred_fallthru
    _
  // Predicated region
  $region6: #{tpu_custom_call.1} parent=0 // pred_check
    _
  $region7: #{tpu_custom_call.1} parent=0 // pred_check_branch
    %20 = sbr.rel (0) target = $region9
  $region8: #{tpu_custom_call.1} parent=0 // pred_region
    _
  $region9: #{tpu_custom_call.1} parent=0 // pred_fallthru
    _
  // Predicated region
  $region10: #{tpu_custom_call.1} parent=0 // pred_check
    _
  $region11: #{tpu_custom_call.1} parent=0 // pred_check_branch
    %22 = sbr.rel (0) target = $region13
  $region12: #{tpu_custom_call.1} parent=0 // pred_region
    _
  $region13: #{tpu_custom_call.1} parent=0 // pred_fallthru
    _
  %s23 = smul.u32 0, 32
  %p24 = scmp.lt.s32.totalorder %s23, 31
  %s25 = scalar_select %p24, %s23, 31
  %s26 = sld [smem:[#allocation3 + %s25]]
  %s27 = scalar_lea.vmem %s1, %s26
  %v28 = vld [vmem:[%s27] sm:$0x1]
  %vm29 = vcmask 188416
  %30 = vst.msk [vmem:[%s4] sm:$0x1] %vm29, %v28
  %s31 = sadd.s32 %s23, 1
  %p32 = scmp.lt.s32.totalorder %s31, 31
  %s33 = scalar_select %p32, %s31, 31
  %s34 = sld [smem:[#allocation3 + %s33]]
  %s35 = scalar_lea.vmem %s1, %s34
  %v36 = vld [vmem:[%s35] sm:$0x1]
  %37 = vst.msk [vmem:[%s4 + $0x1] sm:$0x1] %vm29, %v36
  %s38 = sadd.s32 %s23, 2
  %p39 = scmp.lt.s32.totalorder %s38, 31
  %s40 = scalar_select %p39, %s38, 31
  %s41 = sld [smem:[#allocation3 + %s40]]
  %s42 = scalar_lea.vmem %s1, %s41
  %v43 = vld [vmem:[%s42] sm:$0x1]
  %44 = vst.msk [vmem:[%s4 + $0x2] sm:$0x1] %vm29, %v43
  %s45 = sadd.s32 %s23, 3
  %p46 = scmp.lt.s32.totalorder %s45, 31
  %s47 = scalar_select %p46, %s45, 31
  %s48 = sld [smem:[#allocation3 + %s47]]
  %s49 = scalar_lea.vmem %s1, %s48
  %v50 = vld [vmem:[%s49] sm:$0x1]
  %51 = vst.msk [vmem:[%s4 + $0x3] sm:$0x1] %vm29, %v50
  %s52 = sadd.s32 %s23, 4
  %p53 = scmp.lt.s32.totalorder %s52, 31
  %s54 = scalar_select %p53, %s52, 31
  %s55 = sld [smem:[#allocation3 + %s54]]
  %s56 = scalar_lea.vmem %s1, %s55
  %v57 = vld [vmem:[%s56] sm:$0x1]
  %58 = vst.msk [vmem:[%s4 + $0x4] sm:$0x1] %vm29, %v57
  %s59 = sadd.s32 %s23, 5
  %p60 = scmp.lt.s32.totalorder %s59, 31
  %s61 = scalar_select %p60, %s59, 31
  %s62 = sld [smem:[#allocation3 + %s61]]
  %s63 = scalar_lea.vmem %s1, %s62
  %v64 = vld [vmem:[%s63] sm:$0x1]
  %65 = vst.msk [vmem:[%s4 + $0x5] sm:$0x1] %vm29, %v64
  %s66 = sadd.s32 %s23, 6
  %p67 = scmp.lt.s32.totalorder %s66, 31
  %s68 = scalar_select %p67, %s66, 31
  %s69 = sld [smem:[#allocation3 + %s68]]
  %s70 = scalar_lea.vmem %s1, %s69
  %v71 = vld [vmem:[%s70] sm:$0x1]
  %72 = vst.msk [vmem:[%s4 + $0x6] sm:$0x1] %vm29, %v71
  %s73 = sadd.s32 %s23, 7
  %p74 = scmp.lt.s32.totalorder %s73, 31
  %s75 = scalar_select %p74, %s73, 31
  %s76 = sld [smem:[#allocation3 + %s75]]
  %s77 = scalar_lea.vmem %s1, %s76
  %v78 = vld [vmem:[%s77] sm:$0x1]
  %79 = vst.msk [vmem:[%s4 + $0x7] sm:$0x1] %vm29, %v78
  %s80 = sadd.s32 %s23, 8
  %p81 = scmp.lt.s32.totalorder %s80, 31
  %s82 = scalar_select %p81, %s80, 31
  %s83 = sld [smem:[#allocation3 + %s82]]
  %s84 = scalar_lea.vmem %s1, %s83
  %v85 = vld [vmem:[%s84] sm:$0x1]
  %86 = vst.msk [vmem:[%s4 + $0x8] sm:$0x1] %vm29, %v85
  %s87 = sadd.s32 %s23, 9
  %p88 = scmp.lt.s32.totalorder %s87, 31
  %s89 = scalar_select %p88, %s87, 31
  %s90 = sld [smem:[#allocation3 + %s89]]
  %s91 = scalar_lea.vmem %s1, %s90
  %v92 = vld [vmem:[%s91] sm:$0x1]
  %93 = vst.msk [vmem:[%s4 + $0x9] sm:$0x1] %vm29, %v92
  %s94 = sadd.s32 %s23, 10
  %p95 = scmp.lt.s32.totalorder %s94, 31
  %s96 = scalar_select %p95, %s94, 31
  %s97 = sld [smem:[#allocation3 + %s96]]
  %s98 = scalar_lea.vmem %s1, %s97
  %v99 = vld [vmem:[%s98] sm:$0x1]
  %100 = vst.msk [vmem:[%s4 + $0xa] sm:$0x1] %vm29, %v99
  %s101 = sadd.s32 %s23, 11
  %p102 = scmp.lt.s32.totalorder %s101, 31
  %s103 = scalar_select %p102, %s101, 31
  %s104 = sld [smem:[#allocation3 + %s103]]
  %s105 = scalar_lea.vmem %s1, %s104
  %v106 = vld [vmem:[%s105] sm:$0x1]
  %107 = vst.msk [vmem:[%s4 + $0xb] sm:$0x1] %vm29, %v106
  %s108 = sadd.s32 %s23, 12
  %p109 = scmp.lt.s32.totalorder %s108, 31
  %s110 = scalar_select %p109, %s108, 31
  %s111 = sld [smem:[#allocation3 + %s110]]
  %s112 = scalar_lea.vmem %s1, %s111
  %v113 = vld [vmem:[%s112] sm:$0x1]
  %114 = vst.msk [vmem:[%s4 + $0xc] sm:$0x1] %vm29, %v113
  %s115 = sadd.s32 %s23, 13
  %p116 = scmp.lt.s32.totalorder %s115, 31
  %s117 = scalar_select %p116, %s115, 31
  %s118 = sld [smem:[#allocation3 + %s117]]
  %s119 = scalar_lea.vmem %s1, %s118
  %v120 = vld [vmem:[%s119] sm:$0x1]
  %121 = vst.msk [vmem:[%s4 + $0xd] sm:$0x1] %vm29, %v120
  %s122 = sadd.s32 %s23, 14
  %p123 = scmp.lt.s32.totalorder %s122, 31
  %s124 = scalar_select %p123, %s122, 31
  %s125 = sld [smem:[#allocation3 + %s124]]
  %s126 = scalar_lea.vmem %s1, %s125
  %v127 = vld [vmem:[%s126] sm:$0x1]
  %128 = vst.msk [vmem:[%s4 + $0xe] sm:$0x1] %vm29, %v127
  %s129 = sadd.s32 %s23, 15
  %p130 = scmp.lt.s32.totalorder %s129, 31
  %s131 = scalar_select %p130, %s129, 31
  %s132 = sld [smem:[#allocation3 + %s131]]
  %s133 = scalar_lea.vmem %s1, %s132
  %v134 = vld [vmem:[%s133] sm:$0x1]
  %135 = vst.msk [vmem:[%s4 + $0xf] sm:$0x1] %vm29, %v134
  %s136 = sadd.s32 %s23, 16
  %p137 = scmp.lt.s32.totalorder %s136, 31
  %s138 = scalar_select %p137, %s136, 31
  %s139 = sld [smem:[#allocation3 + %s138]]
  %s140 = scalar_lea.vmem %s1, %s139
  %v141 = vld [vmem:[%s140] sm:$0x1]
  %142 = vst.msk [vmem:[%s4 + $0x10] sm:$0x1] %vm29, %v141
  %s143 = sadd.s32 %s23, 17
  %p144 = scmp.lt.s32.totalorder %s143, 31
  %s145 = scalar_select %p144, %s143, 31
  %s146 = sld [smem:[#allocation3 + %s145]]
  %s147 = scalar_lea.vmem %s1, %s146
  %v148 = vld [vmem:[%s147] sm:$0x1]
  %149 = vst.msk [vmem:[%s4 + $0x11] sm:$0x1] %vm29, %v148
  %s150 = sadd.s32 %s23, 18
  %p151 = scmp.lt.s32.totalorder %s150, 31
  %s152 = scalar_select %p151, %s150, 31
  %s153 = sld [smem:[#allocation3 + %s152]]
  %s154 = scalar_lea.vmem %s1, %s153
  %v155 = vld [vmem:[%s154] sm:$0x1]
  %156 = vst.msk [vmem:[%s4 + $0x12] sm:$0x1] %vm29, %v155
  %s157 = sadd.s32 %s23, 19
  %p158 = scmp.lt.s32.totalorder %s157, 31
  %s159 = scalar_select %p158, %s157, 31
  %s160 = sld [smem:[#allocation3 + %s159]]
  %s161 = scalar_lea.vmem %s1, %s160
  %v162 = vld [vmem:[%s161] sm:$0x1]
  %163 = vst.msk [vmem:[%s4 + $0x13] sm:$0x1] %vm29, %v162
  %s164 = sadd.s32 %s23, 20
  %p165 = scmp.lt.s32.totalorder %s164, 31
  %s166 = scalar_select %p165, %s164, 31
  %s167 = sld [smem:[#allocation3 + %s166]]
  %s168 = scalar_lea.vmem %s1, %s167
  %v169 = vld [vmem:[%s168] sm:$0x1]
  %170 = vst.msk [vmem:[%s4 + $0x14] sm:$0x1] %vm29, %v169
  %s171 = sadd.s32 %s23, 21
  %p172 = scmp.lt.s32.totalorder %s171, 31
  %s173 = scalar_select %p172, %s171, 31
  %s174 = sld [smem:[#allocation3 + %s173]]
  %s175 = scalar_lea.vmem %s1, %s174
  %v176 = vld [vmem:[%s175] sm:$0x1]
  %177 = vst.msk [vmem:[%s4 + $0x15] sm:$0x1] %vm29, %v176
  %s178 = sadd.s32 %s23, 22
  %p179 = scmp.lt.s32.totalorder %s178, 31
  %s180 = scalar_select %p179, %s178, 31
  %s181 = sld [smem:[#allocation3 + %s180]]
  %s182 = scalar_lea.vmem %s1, %s181
  %v183 = vld [vmem:[%s182] sm:$0x1]
  %184 = vst.msk [vmem:[%s4 + $0x16] sm:$0x1] %vm29, %v183
  %s185 = sadd.s32 %s23, 23
  %p186 = scmp.lt.s32.totalorder %s185, 31
  %s187 = scalar_select %p186, %s185, 31
  %s188 = sld [smem:[#allocation3 + %s187]]
  %s189 = scalar_lea.vmem %s1, %s188
  %v190 = vld [vmem:[%s189] sm:$0x1]
  %191 = vst.msk [vmem:[%s4 + $0x17] sm:$0x1] %vm29, %v190
  %s192 = sadd.s32 %s23, 24
  %p193 = scmp.lt.s32.totalorder %s192, 31
  %s194 = scalar_select %p193, %s192, 31
  %s195 = sld [smem:[#allocation3 + %s194]]
  %s196 = scalar_lea.vmem %s1, %s195
  %v197 = vld [vmem:[%s196] sm:$0x1]
  %198 = vst.msk [vmem:[%s4 + $0x18] sm:$0x1] %vm29, %v197
  %s199 = sadd.s32 %s23, 25
  %p200 = scmp.lt.s32.totalorder %s199, 31
  %s201 = scalar_select %p200, %s199, 31
  %s202 = sld [smem:[#allocation3 + %s201]]
  %s203 = scalar_lea.vmem %s1, %s202
  %v204 = vld [vmem:[%s203] sm:$0x1]
  %205 = vst.msk [vmem:[%s4 + $0x19] sm:$0x1] %vm29, %v204
  %s206 = sadd.s32 %s23, 26
  %p207 = scmp.lt.s32.totalorder %s206, 31
  %s208 = scalar_select %p207, %s206, 31
  %s209 = sld [smem:[#allocation3 + %s208]]
  %s210 = scalar_lea.vmem %s1, %s209
  %v211 = vld [vmem:[%s210] sm:$0x1]
  %212 = vst.msk [vmem:[%s4 + $0x1a] sm:$0x1] %vm29, %v211
  %s213 = sadd.s32 %s23, 27
  %p214 = scmp.lt.s32.totalorder %s213, 31
  %s215 = scalar_select %p214, %s213, 31
  %s216 = sld [smem:[#allocation3 + %s215]]
  %s217 = scalar_lea.vmem %s1, %s216
  %v218 = vld [vmem:[%s217] sm:$0x1]
  %219 = vst.msk [vmem:[%s4 + $0x1b] sm:$0x1] %vm29, %v218
  %s220 = sadd.s32 %s23, 28
  %p221 = scmp.lt.s32.totalorder %s220, 31
  %s222 = scalar_select %p221, %s220, 31
  %s223 = sld [smem:[#allocation3 + %s222]]
  %s224 = scalar_lea.vmem %s1, %s223
  %v225 = vld [vmem:[%s224] sm:$0x1]
  %226 = vst.msk [vmem:[%s4 + $0x1c] sm:$0x1] %vm29, %v225
  %s227 = sadd.s32 %s23, 29
  %p228 = scmp.lt.s32.totalorder %s227, 31
  %s229 = scalar_select %p228, %s227, 31
  %s230 = sld [smem:[#allocation3 + %s229]]
  %s231 = scalar_lea.vmem %s1, %s230
  %v232 = vld [vmem:[%s231] sm:$0x1]
  %233 = vst.msk [vmem:[%s4 + $0x1d] sm:$0x1] %vm29, %v232
  %s234 = sadd.s32 %s23, 30
  %p235 = scmp.lt.s32.totalorder %s234, 31
  %s236 = scalar_select %p235, %s234, 31
  %s237 = sld [smem:[#allocation3 + %s236]]
  %s238 = scalar_lea.vmem %s1, %s237
  %v239 = vld [vmem:[%s238] sm:$0x1]
  %240 = vst.msk [vmem:[%s4 + $0x1e] sm:$0x1] %vm29, %v239
  %s241 = sadd.s32 %s23, 31
  %p242 = scmp.lt.s32.totalorder %s241, 31
  %s243 = scalar_select %p242, %s241, 31
  %s244 = sld [smem:[#allocation3 + %s243]]
  %s245 = scalar_lea.vmem %s1, %s244
  %v246 = vld [vmem:[%s245] sm:$0x1]
  %247 = vst.msk [vmem:[%s4 + $0x1f] sm:$0x1] %vm29, %v246
  %v248 = vld [vmem:[%s4] sm:$0xff]
  %v249 = vld [vmem:[%s4 + $0x8] sm:$0xff]
  %v250 = vld [vmem:[%s4 + $0x10] sm:$0xff]
  %v251 = vld [vmem:[%s4 + $0x18] sm:$0xff]
  %v252 = vld [vmem:[%s2] sm:$0xff]
  %v253 = vld [vmem:[%s2 + $0x8] sm:$0xff]
  %v254 = vld [vmem:[%s2 + $0x10] sm:$0xff]
  %v255 = vld [vmem:[%s2 + $0x18] sm:$0xff]
  %v256 = vld [vmem:[%s3] sm:$0xff]
  %v257 = vld [vmem:[%s3 + $0x8] sm:$0xff]
  %v258 = vld [vmem:[%s3 + $0x10] sm:$0xff]
  %v259 = vld [vmem:[%s3 + $0x18] sm:$0xff]
  %v260 = vmul.f32 %v248, %v248
  %v261 = vmul.f32 %v249, %v249
  %v262 = vmul.f32 %v250, %v250
  %v263 = vmul.f32 %v251, %v251
  %vm264 = vcmask 195584
  %v265 = vsel %vm264, %v260, 0.0
  %266 = vadd.xlane.f32.xlu0 %v265
  %v267 = vpop.xlane.xlu0 %266
  %v268 = vsel %vm264, %v261, 0.0
  %269 = vadd.xlane.f32.xlu0 %v268
  %v270 = vpop.xlane.xlu0 %269
  %v271 = vsel %vm264, %v262, 0.0
  %272 = vadd.xlane.f32.xlu0 %v271
  %v273 = vpop.xlane.xlu0 %272
  %v274 = vsel %vm264, %v263, 0.0
  %275 = vadd.xlane.f32.xlu0 %v274
  %v276 = vpop.xlane.xlu0 %275
  %v277 = vrsqrt.pop %v267
  %v278 = vmul.f32 %v277, %v267
  %v279 = vmul.f32 %v278, %v277
  %v280 = vmul.f32 0.5, %v279
  %v281 = vsub.f32 1.5, %v280
  %v282 = vmul.f32 %v277, %v281
  %v283 = vmul.f32 %v267, %v282
  %vm284 = vcmp.eq.f32.partialorder %v267, inf
  %v285 = vsel %vm284, %v267, %v283
  %vm286 = vcmp.eq.f32.partialorder %v267, 0.0
  %v287 = vand.u32 %v267, 2147483648
  %v288 = vsel %vm286, %v287, %v285
  %v289 = vrsqrt.pop %v270
  %v290 = vmul.f32 %v289, %v270
  %v291 = vmul.f32 %v290, %v289
  %v292 = vmul.f32 0.5, %v291
  %v293 = vsub.f32 1.5, %v292
  %v294 = vmul.f32 %v289, %v293
  %v295 = vmul.f32 %v270, %v294
  %vm296 = vcmp.eq.f32.partialorder %v270, inf
  %v297 = vsel %vm296, %v270, %v295
  %vm298 = vcmp.eq.f32.partialorder %v270, 0.0
  %v299 = vand.u32 %v270, 2147483648
  %v300 = vsel %vm298, %v299, %v297
  %v301 = vrsqrt.pop %v273
  %v302 = vmul.f32 %v301, %v273
  %v303 = vmul.f32 %v302, %v301
  %v304 = vmul.f32 0.5, %v303
  %v305 = vsub.f32 1.5, %v304
  %v306 = vmul.f32 %v301, %v305
  %v307 = vmul.f32 %v273, %v306
  %vm308 = vcmp.eq.f32.partialorder %v273, inf
  %v309 = vsel %vm308, %v273, %v307
  %vm310 = vcmp.eq.f32.partialorder %v273, 0.0
  %v311 = vand.u32 %v273, 2147483648
  %v312 = vsel %vm310, %v311, %v309
  %v313 = vrsqrt.pop %v276
  %v314 = vmul.f32 %v313, %v276
  %v315 = vmul.f32 %v314, %v313
  %v316 = vmul.f32 0.5, %v315
  %v317 = vsub.f32 1.5, %v316
  %v318 = vmul.f32 %v313, %v317
  %v319 = vmul.f32 %v276, %v318
  %vm320 = vcmp.eq.f32.partialorder %v276, inf
  %v321 = vsel %vm320, %v276, %v319
  %vm322 = vcmp.eq.f32.partialorder %v276, 0.0
  %v323 = vand.u32 %v276, 2147483648
  %v324 = vsel %vm322, %v323, %v321
  %vm325 = vcmp.gt.f32.partialorder %v288, 1.0
  %vm326 = vcmp.gt.f32.partialorder %v300, 1.0
  %vm327 = vcmp.gt.f32.partialorder %v312, 1.0
  %vm328 = vcmp.gt.f32.partialorder %v324, 1.0
  %v329 = vadd.f32 %v288, 1e-07
  %v330 = vadd.f32 %v300, 1e-07
  %v331 = vadd.f32 %v312, 1e-07
  %v332 = vadd.f32 %v324, 1e-07
  %v333 = vrcp.pop %v329
  %v334 = vmul.f32 %v329, %v333
  %v335 = vsub.f32 1.0, %v334
  %v336 = vmul.f32 %v333, %v335
  %v337 = vadd.f32 %v333, %v336
  %vm338 = vweird.f32 %v329
  %vm339 = vweird.f32 %v333
  %vm340 = vmor %vm338, %vm339
  %v341 = vsel %vm340, %v333, %v337
  %v342 = vand.u32 2147483647, %v329
  %vm343 = vcmp.eq.f32.partialorder %v342, 8.507059e+37
  %v344 = vand.u32 %v329, 2147483648
  %v345 = vor.u32 1.1754944e-38, %v344
  %v346 = vsel %vm343, %v345, %v341
  %v347 = vmul.f32 1.0, %v346
  %v348 = vrcp.pop %v330
  %v349 = vmul.f32 %v330, %v348
  %v350 = vsub.f32 1.0, %v349
  %v351 = vmul.f32 %v348, %v350
  %v352 = vadd.f32 %v348, %v351
  %vm353 = vweird.f32 %v330
  %vm354 = vweird.f32 %v348
  %vm355 = vmor %vm353, %vm354
  %v356 = vsel %vm355, %v348, %v352
  %v357 = vand.u32 2147483647, %v330
  %vm358 = vcmp.eq.f32.partialorder %v357, 8.507059e+37
  %v359 = vand.u32 %v330, 2147483648
  %v360 = vor.u32 1.1754944e-38, %v359
  %v361 = vsel %vm358, %v360, %v356
  %v362 = vmul.f32 1.0, %v361
  %v363 = vrcp.pop %v331
  %v364 = vmul.f32 %v331, %v363
  %v365 = vsub.f32 1.0, %v364
  %v366 = vmul.f32 %v363, %v365
  %v367 = vadd.f32 %v363, %v366
  %vm368 = vweird.f32 %v331
  %vm369 = vweird.f32 %v363
  %vm370 = vmor %vm368, %vm369
  %v371 = vsel %vm370, %v363, %v367
  %v372 = vand.u32 2147483647, %v331
  %vm373 = vcmp.eq.f32.partialorder %v372, 8.507059e+37
  %v374 = vand.u32 %v331, 2147483648
  %v375 = vor.u32 1.1754944e-38, %v374
  %v376 = vsel %vm373, %v375, %v371
  %v377 = vmul.f32 1.0, %v376
  %v378 = vrcp.pop %v332
  %v379 = vmul.f32 %v332, %v378
  %v380 = vsub.f32 1.0, %v379
  %v381 = vmul.f32 %v378, %v380
  %v382 = vadd.f32 %v378, %v381
  %vm383 = vweird.f32 %v332
  %vm384 = vweird.f32 %v378
  %vm385 = vmor %vm383, %vm384
  %v386 = vsel %vm385, %v378, %v382
  %v387 = vand.u32 2147483647, %v332
  %vm388 = vcmp.eq.f32.partialorder %v387, 8.507059e+37
  %v389 = vand.u32 %v332, 2147483648
  %v390 = vor.u32 1.1754944e-38, %v389
  %v391 = vsel %vm388, %v390, %v386
  %v392 = vmul.f32 1.0, %v391
  %v393 = vsel %vm325, %v347, 1.0
  %v394 = vsel %vm326, %v362, 1.0
  %v395 = vsel %vm327, %v377, 1.0
  %v396 = vsel %vm328, %v392, 1.0
  %v397 = vmul.f32 %v248, %v393
  %v398 = vmul.f32 %v249, %v394
  %v399 = vmul.f32 %v250, %v395
  %v400 = vmul.f32 %v251, %v396
  %v401 = vmul.f32 %v397, %v252
  %v402 = vmul.f32 %v398, %v253
  %v403 = vmul.f32 %v399, %v254
  %v404 = vmul.f32 %v400, %v255
  %v405 = vadd.f32 %v401, %v256
  %v406 = vadd.f32 %v402, %v257
  %v407 = vadd.f32 %v403, %v258
  %v408 = vadd.f32 %v404, %v259
  %409 = vst.msk [vmem:[%s4] sm:$0xff] %vm264, %v405
  %410 = vst.msk [vmem:[%s4 + $0x8] sm:$0xff] %vm264, %v406
  %411 = vst.msk [vmem:[%s4 + $0x10] sm:$0xff] %vm264, %v407
  %412 = vst.msk [vmem:[%s4 + $0x18] sm:$0xff] %vm264, %v408
  // Predicated region
  $region14: #{tpu_custom_call.1} parent=0 // pred_check
    _
  $region15: #{tpu_custom_call.1} parent=0 // pred_check_branch
    %414 = sbr.rel (0) target = $region17
  $region16: #{tpu_custom_call.1} parent=0 // pred_region
    _
  $region17: #{tpu_custom_call.1} parent=0 // pred_fallthru
    _
  // Predicated region
  $region18: #{tpu_custom_call.1} parent=0 // pred_check
    _
  $region19: #{tpu_custom_call.1} parent=0 // pred_check_branch
    %416 = sbr.rel (0) target = $region21
  $region20: #{tpu_custom_call.1} parent=0 // pred_region
    _
  $region21: #{tpu_custom_call.1} parent=0 // pred_fallthru
    _

</llo_original>
